<compile_context>
chip_gen: v5e
topology: v5e:2x2
jax: 0.10.0
libtpu: 0.0.40
codegen_flags: <defaults>
</compile_context>

<pallas_src>
import math
import functools

import jax
import jax.numpy as jnp
from jax.experimental import pallas as pl
from jax.experimental.pallas import tpu as pltpu

NUM_CLASS = 5
TEMPERATURE = 0.07
BASE_TEMPERATURE = 0.07
MARGIN = 0.5
EASY_MARGIN = False

COS_M = math.cos(MARGIN)
SIN_M = math.sin(MARGIN)
TH = math.cos(math.pi - MARGIN)
MM = math.sin(math.pi - MARGIN) * MARGIN


def _mpcl_kernel(lab_ref, feat_ref, center_ref, out_ref):
    # lab_ref:    [1, TM]         int32    per-pixel class labels (lane-dense)
    # feat_ref:   [TM, C]         f32/bf16 normalized features, row-major (no HBM transpose)
    # center_ref: [NUM_CLASS, C]  float32  normalized class centers (resident)
    # out_ref:    [1, TM]         float32  per-pixel loss rows (lane-dense store)
    f = feat_ref[...].astype(jnp.float32)          # cheap VPU upcast if bf16
    centers = center_ref[...]                      # [NC, C]

    # cosine[k, m] = <center_k, feature_m>; contract the channel axes so the
    # operand "transpose" happens on the MXU (trans_b) instead of in HBM.
    cosine = jax.lax.dot_general(
        centers, f,
        dimension_numbers=(((1,), (1,)), ((), ())),
        preferred_element_type=jnp.float32)        # [NC, TM], classes on sublanes

    labels = lab_ref[...]                          # [1, TM]
    class_ids = jax.lax.broadcasted_iota(jnp.int32, cosine.shape, 0)
    is_pos = labels == class_ids                   # [NC, TM] bool

    inv_t = 1.0 / TEMPERATURE

    # plain logits, per-pixel (per-lane) max subtracted (matches detach'd max)
    logits = cosine * inv_t
    logits = logits - jnp.max(logits, axis=0, keepdims=True)

    # arc-margin logits
    # TODO(synk): if an EUP-bound profile shows up on v7x, phi/sqrt could be
    # computed for <= 2 classes per pixel; left as-is (piecewise-monotone risk).
    sine = jnp.sqrt(jnp.clip(1.0 - cosine * cosine, 0.0001, 1.0))
    phi = cosine * COS_M - sine * SIN_M
    if EASY_MARGIN:
        phi = jnp.where(cosine > 0.0, phi, cosine)
    else:
        phi = jnp.where(cosine > TH, phi, cosine - MM)
    phi_logits = phi * inv_t
    phi_logits = phi_logits - jnp.max(phi_logits, axis=0, keepdims=True)

    # single vselect: margin logits at the positive class, plain logits elsewhere
    combined = jnp.where(is_pos, phi_logits, logits)

    denom = jnp.sum(jnp.exp(combined), axis=0, keepdims=True) + 0.0001
    log_prob = combined - jnp.log(denom)

    # (mask * log_prob).sum over classes -> per-pixel positive log-prob [1, TM]
    pos_log_prob = jnp.sum(jnp.where(is_pos, log_prob, 0.0), axis=0, keepdims=True)
    out_ref[...] = -(TEMPERATURE / BASE_TEMPERATURE) * pos_log_prob


def _choose_tile_rows(n, c, itemsize, tile_rows):
    """Static (Python-int) row-tile selection."""
    n_up = ((n + 127) // 128) * 128
    if tile_rows is None:
        # Target ~4 MiB of feature DMA per grid step so the ~0.35 us/step
        # pipeline overhead is well amortised even on v7x's 3.2 TB/s HBM.
        target_dma = 4 * 1024 * 1024
        t = target_dma // max(1, c * itemsize)
        # VMEM cap: the feature block is lane-padded to >=128 lanes and
        # double-buffered; keep that slab <= ~16 MiB so the whole kernel stays
        # comfortably inside v7x's 64 MiB/TC physical VMEM.
        lane_c = max(c, 128)
        vmem_cap = (16 * 1024 * 1024) // (2 * lane_c * itemsize)
        t = min(t, vmem_cap, 16384)
        t = max(t, 1024)
    else:
        t = max(tile_rows, 128)
    t = max(128, (t // 128) * 128)
    t = min(t, n_up)
    # v7x has 2 TensorCores; make sure the "parallel" grid axis has >= 2 steps
    # whenever there is more than one lane-tile of rows, so neither core idles.
    if t >= n_up and n_up >= 256:
        half = n_up // 2
        t = ((half + 127) // 128) * 128
    return t


def _per_row_loss(feat, labels_2d, centers, tile_rows):
    """feat: [N, C] (f32/bf16), labels_2d: [1, N] i32, centers: [NC, C] f32.
    Returns the per-pixel loss rows [N] (ragged tail handled via partial
    edge blocks; no wrapper-side padding copies)."""
    n, c = feat.shape
    t = _choose_tile_rows(n, c, feat.dtype.itemsize, tile_rows)
    grid = pl.cdiv(n, t)

    per_row = pl.pallas_call(
        _mpcl_kernel,
        out_shape=jax.ShapeDtypeStruct((1, n), jnp.float32),
        grid_spec=pltpu.PrefetchScalarGridSpec(
            num_scalar_prefetch=0,
            grid=(grid,),
            in_specs=[
                pl.BlockSpec((1, t), lambda i: (0, i)),          # labels (lane-dense)
                pl.BlockSpec((t, c), lambda i: (i, 0)),          # features [N, C], contiguous rows
                pl.BlockSpec((NUM_CLASS, c), lambda i: (0, 0)),  # centers (resident)
            ],
            out_specs=pl.BlockSpec((1, t), lambda i: (0, i)),
        ),
        compiler_params=pltpu.CompilerParams(
            dimension_semantics=("parallel",),
            # <= v7x's 64 MiB physical VMEM, generous on v5e/v6e's 128 MiB.
            vmem_limit_bytes=48 * 1024 * 1024,
        ),
    )(labels_2d, feat, centers)

    return per_row[0, :]


@functools.partial(jax.jit, static_argnames=("tile_rows",))
def mpcl_loss(features, labels, class_center_feas, pixel_mask=None, tile_rows=None):
    """features: [N, n_views, C] (n_views must be 1), labels: [N],
    class_center_feas: [C, NUM_CLASS], pixel_mask: optional [N]."""
    n, n_views, c = features.shape
    assert n_views == 1, "kernel implements the n_views == 1 case used in practice"

    feat = features.reshape(n, c)
    # Opt-in bandwidth mode: bf16 features are streamed as bf16 and upcast to
    # f32 on-chip; anything else is computed in f32.
    if feat.dtype != jnp.bfloat16:
        feat = feat.astype(jnp.float32)
    labels_2d = labels.reshape(1, n).astype(jnp.int32)
    centers = jnp.transpose(class_center_feas.astype(jnp.float32))    # [NC, C] (tiny)

    per_row = _per_row_loss(feat, labels_2d, centers, tile_rows)       # [N]

    if pixel_mask is not None:
        pm = pixel_mask.reshape(-1).astype(jnp.float32)
        return jnp.sum(pm * per_row) / (jnp.sum(pm) + 0.0001)
    # anchor_count = 1 -> view(1, N).mean() == mean over rows
    # TODO(synk): per-tile partial-sum fusion (skipping the [1,N] writeback) is
    # a further ~6% traffic win at C=32; kept simple for the masked path.
    return jnp.mean(per_row)


def _mpcl_reference(features, labels, class_center_feas, pixel_mask=None):
    """Pure-JAX reference mirroring the PyTorch forward (n_views=1)."""
    n, _, c = features.shape
    anchor = features.reshape(n, c).astype(jnp.float32)
    labels = labels.reshape(n, 1).astype(jnp.int32)
    class_ids = jnp.arange(NUM_CLASS, dtype=jnp.int32).reshape(1, NUM_CLASS)
    mask = (labels == class_ids).astype(jnp.float32)
    cosine = anchor @ class_center_feas
    logits = cosine / TEMPERATURE
    logits = logits - jnp.max(logits, axis=1, keepdims=True)
    sine = jnp.sqrt(jnp.clip(1.0 - cosine ** 2, 0.0001, 1.0))
    phi = cosine * COS_M - sine * SIN_M
    phi = jnp.where(cosine > TH, phi, cosine - MM)
    phi_logits = phi / TEMPERATURE
    phi_logits = phi_logits - jnp.max(phi_logits, axis=1, keepdims=True)
    tag_1 = 1.0 - mask
    combined = logits * tag_1 + phi_logits * mask
    exp_logits = jnp.exp(combined)
    log_prob = combined - jnp.log(jnp.sum(exp_logits, axis=1, keepdims=True) + 0.0001)
    mean_log_prob_pos = jnp.sum(mask * log_prob, axis=1)
    loss_rows = -(TEMPERATURE / BASE_TEMPERATURE) * mean_log_prob_pos
    if pixel_mask is not None:
        pm = pixel_mask.reshape(-1).astype(jnp.float32)
        return jnp.sum(pm * loss_rows) / (jnp.sum(pm) + 0.0001)
    return jnp.mean(loss_rows)


if __name__ == "__main__":
    key = jax.random.PRNGKey(0)

    def make_inputs(k, n, c):
        k_feat, k_lab, k_cen = jax.random.split(k, 3)
        feats = jax.random.normal(k_feat, (n, 1, c), dtype=jnp.float32)
        feats = feats / (jnp.linalg.norm(feats, axis=-1, keepdims=True) + 1e-8)
        labs = jax.random.randint(k_lab, (n,), 0, NUM_CLASS, dtype=jnp.int32)
        cen = jax.random.normal(k_cen, (c, NUM_CLASS), dtype=jnp.float32)
        cen = cen / (jnp.linalg.norm(cen, axis=0, keepdims=True) + 1e-8)
        return feats, labs, cen

    k1, k2 = jax.random.split(key)

    # Test 1: batch=2, H=W=16, C=32 -> N = 512 pixel rows (2-step parallel grid).
    B, H, W, C = 2, 16, 16, 32
    N = B * H * W
    feats, labs, centers = make_inputs(k1, N, C)
    loss = jax.block_until_ready(mpcl_loss(feats, labs, centers))
    ref = jax.block_until_ready(_mpcl_reference(feats, labs, centers))
    assert jnp.allclose(loss, ref, rtol=1e-4, atol=1e-4), (loss, ref)

    # Test 2: N not a multiple of 128 -> exercises the partial edge block path
    # (no wrapper-side jnp.pad copies).
    N2 = 300
    feats2, labs2, centers2 = make_inputs(k2, N2, C)
    loss2 = jax.block_until_ready(mpcl_loss(feats2, labs2, centers2))
    ref2 = jax.block_until_ready(_mpcl_reference(feats2, labs2, centers2))
    assert jnp.allclose(loss2, ref2, rtol=1e-4, atol=1e-4), (loss2, ref2)

    # Test 3: pixel_mask path.
    pm = (labs2 % 2 == 0).astype(jnp.float32)
    loss3 = jax.block_until_ready(mpcl_loss(feats2, labs2, centers2, pm))
    ref3 = jax.block_until_ready(_mpcl_reference(feats2, labs2, centers2, pm))
    assert jnp.allclose(loss3, ref3, rtol=1e-4, atol=1e-4), (loss3, ref3)

    # Test 4: opt-in bf16 feature stream (v5e/v6e bandwidth mode); compare
    # against the reference evaluated on identically quantized features.
    feats_bf16 = feats.astype(jnp.bfloat16)
    loss4 = jax.block_until_ready(mpcl_loss(feats_bf16, labs, centers))
    ref4 = jax.block_until_ready(
        _mpcl_reference(feats_bf16.astype(jnp.float32), labs, centers))
    assert jnp.allclose(loss4, ref4, rtol=1e-2, atol=1e-2), (loss4, ref4)

    print("KERNEL_OK")
</pallas_src>

<mosaic_0001>
module attributes {stable_mosaic.version = 11 : i64} {
  func.func @_mpcl_kernel(%arg0: i32, %arg1: memref<1x256xi32, #tpu.memory_space<vmem>>, %arg2: memref<256x32xf32, #tpu.memory_space<vmem>>, %arg3: memref<5x32xf32, #tpu.memory_space<vmem>>, %arg4: memref<1x256xf32, #tpu.memory_space<vmem>>) attributes {dimension_semantics = [#tpu.dimension_semantics<parallel>], iteration_bounds = array<i64: 2>, scalar_prefetch = 0 : i64, scratch_operands = 0 : i64, tpu.core_type = #tpu.core_type<tc>, window_params = [{transform_indices = @transform_0, window_bounds = array<i64: 1, 256>}, {transform_indices = @transform_1, window_bounds = array<i64: 256, 32>}, {pipeline_mode = #tpu.pipeline_mode<synchronous>, transform_indices = @transform_2, window_bounds = array<i64: 5, 32>}, {transform_indices = @transform_3, window_bounds = array<i64: 1, 256>}]} {
    %c0 = arith.constant 0 : index
    %c0_0 = arith.constant 0 : index
    %0 = vector.load %arg2[%c0, %c0_0] : memref<256x32xf32, #tpu.memory_space<vmem>>, vector<256x32xf32>
    %c0_1 = arith.constant 0 : index
    %c0_2 = arith.constant 0 : index
    %1 = vector.load %arg3[%c0_1, %c0_2] : memref<5x32xf32, #tpu.memory_space<vmem>>, vector<5x32xf32>
    %cst = arith.constant dense<0.000000e+00> : vector<5x256xf32>
    %2 = tpu.matmul %1, %0, %cst {dimension_numbers = #tpu.dot_dimension_numbers<[1], [1], [0], [0], [0, 0, 1, 0], [], []>} : vector<5x32xf32>, vector<256x32xf32>, vector<5x256xf32> -> vector<5x256xf32>
    %c0_3 = arith.constant 0 : index
    %c0_4 = arith.constant 0 : index
    %3 = vector.load %arg1[%c0_3, %c0_4] : memref<1x256xi32, #tpu.memory_space<vmem>>, vector<1x256xi32>
    %4 = tpu.iota {dimensions = array<i32: 0>} : vector<5x256xi32>
    %5 = vector.broadcast %3 : vector<1x256xi32> to vector<5x256xi32>
    %6 = arith.cmpi eq, %5, %4 : vector<5x256xi32>
    %cst_5 = arith.constant 14.2857141 : f32
    %7 = vector.broadcast %cst_5 : f32 to vector<5x256xf32>
    %8 = arith.mulf %2, %7 : vector<5x256xf32>
    %cst_6 = arith.constant dense<0xFF800000> : vector<256xf32>
    %9 = vector.multi_reduction <maximumf>, %8, %cst_6 [0] : vector<5x256xf32> to vector<256xf32>
    %10 = vector.shape_cast %9 : vector<256xf32> to vector<1x256xf32>
    %11 = vector.broadcast %10 : vector<1x256xf32> to vector<5x256xf32>
    %12 = arith.subf %8, %11 : vector<5x256xf32>
    %13 = arith.mulf %2, %2 : vector<5x256xf32>
    %cst_7 = arith.constant 1.000000e+00 : f32
    %14 = vector.broadcast %cst_7 : f32 to vector<5x256xf32>
    %15 = arith.subf %14, %13 : vector<5x256xf32>
    %cst_8 = arith.constant 9.99999974E-5 : f32
    %cst_9 = arith.constant 1.000000e+00 : f32
    %16 = vector.broadcast %cst_8 : f32 to vector<5x256xf32>
    %17 = arith.maximumf %16, %15 : vector<5x256xf32>
    %18 = vector.broadcast %cst_9 : f32 to vector<5x256xf32>
    %19 = arith.minimumf %18, %17 : vector<5x256xf32>
    %20 = math.sqrt %19 : vector<5x256xf32>
    %cst_10 = arith.constant 0.87758255 : f32
    %21 = vector.broadcast %cst_10 : f32 to vector<5x256xf32>
    %22 = arith.mulf %2, %21 : vector<5x256xf32>
    %cst_11 = arith.constant 0.47942555 : f32
    %23 = vector.broadcast %cst_11 : f32 to vector<5x256xf32>
    %24 = arith.mulf %20, %23 : vector<5x256xf32>
    %25 = arith.subf %22, %24 : vector<5x256xf32>
    %cst_12 = arith.constant -0.87758255 : f32
    %26 = vector.broadcast %cst_12 : f32 to vector<5x256xf32>
    %27 = arith.cmpf ogt, %2, %26 : vector<5x256xf32>
    %cst_13 = arith.constant 0.239712775 : f32
    %28 = vector.broadcast %cst_13 : f32 to vector<5x256xf32>
    %29 = arith.subf %2, %28 : vector<5x256xf32>
    %30 = arith.select %27, %25, %29 : vector<5x256xi1>, vector<5x256xf32>
    %cst_14 = arith.constant 14.2857141 : f32
    %31 = vector.broadcast %cst_14 : f32 to vector<5x256xf32>
    %32 = arith.mulf %30, %31 : vector<5x256xf32>
    %cst_15 = arith.constant dense<0xFF800000> : vector<256xf32>
    %33 = vector.multi_reduction <maximumf>, %32, %cst_15 [0] : vector<5x256xf32> to vector<256xf32>
    %34 = vector.shape_cast %33 : vector<256xf32> to vector<1x256xf32>
    %35 = vector.broadcast %34 : vector<1x256xf32> to vector<5x256xf32>
    %36 = arith.subf %32, %35 : vector<5x256xf32>
    %37 = arith.select %6, %36, %12 : vector<5x256xi1>, vector<5x256xf32>
    %38 = math.exp %37 : vector<5x256xf32>
    %cst_16 = arith.constant dense<0.000000e+00> : vector<256xf32>
    %39 = vector.multi_reduction <add>, %38, %cst_16 [0] : vector<5x256xf32> to vector<256xf32>
    %40 = vector.shape_cast %39 : vector<256xf32> to vector<1x256xf32>
    %cst_17 = arith.constant 9.99999974E-5 : f32
    %41 = vector.broadcast %cst_17 : f32 to vector<1x256xf32>
    %42 = arith.addf %40, %41 : vector<1x256xf32>
    %43 = math.log %42 : vector<1x256xf32>
    %44 = vector.broadcast %43 : vector<1x256xf32> to vector<5x256xf32>
    %45 = arith.subf %37, %44 : vector<5x256xf32>
    %cst_18 = arith.constant 0.000000e+00 : f32
    %46 = vector.broadcast %cst_18 : f32 to vector<5x256xf32>
    %47 = arith.select %6, %45, %46 : vector<5x256xi1>, vector<5x256xf32>
    %cst_19 = arith.constant dense<0.000000e+00> : vector<256xf32>
    %48 = vector.multi_reduction <add>, %47, %cst_19 [0] : vector<5x256xf32> to vector<256xf32>
    %49 = vector.shape_cast %48 : vector<256xf32> to vector<1x256xf32>
    %cst_20 = arith.constant -1.000000e+00 : f32
    %50 = vector.broadcast %cst_20 : f32 to vector<1x256xf32>
    %51 = arith.mulf %50, %49 : vector<1x256xf32>
    %c0_21 = arith.constant 0 : index
    %c0_22 = arith.constant 0 : index
    %52 = vector.load %arg4[%c0_21, %c0_22] : memref<1x256xf32, #tpu.memory_space<vmem>>, vector<1x256xf32>
    tpu.vector_store %arg4[%c0_21, %c0_22], %51 {strides = array<i32>} : memref<1x256xf32, #tpu.memory_space<vmem>>, vector<1x256xf32>,
    return
  }
  func.func @transform_0(%arg0: i32) -> (i32, i32) {
    %c0_i32 = arith.constant 0 : i32
    %c0_i32_0 = arith.constant 0 : i32
    return %c0_i32, %arg0 : i32, i32
  }
  func.func @transform_1(%arg0: i32) -> (i32, i32) {
    %c0_i32 = arith.constant 0 : i32
    %c0_i32_0 = arith.constant 0 : i32
    return %arg0, %c0_i32 : i32, i32
  }
  func.func @transform_2(%arg0: i32) -> (i32, i32) {
    %c0_i32 = arith.constant 0 : i32
    %c0_i32_0 = arith.constant 0 : i32
    %c0_i32_1 = arith.constant 0 : i32
    return %c0_i32, %c0_i32_0 : i32, i32
  }
  func.func @transform_3(%arg0: i32) -> (i32, i32) {
    %c0_i32 = arith.constant 0 : i32
    %c0_i32_0 = arith.constant 0 : i32
    return %c0_i32, %arg0 : i32, i32
  }
}

</mosaic_0001>

<llo_original>
// kernel: mpcl_loss.1
$region0: #{mpcl_loss.1}
  #allocation0 [shape = 'u32[]', space=smem, size = 0x4, offset = 0x4, fixed_abs, tag = 'smem constant byte address 0x4 - core index']
  #allocation1 [shape = 'u32[72,128]{1,0:T(1,128)}', space=vmem, size = 0x9000, scoped, tag = 'internal scratch']
  %s0 = inlined_call_operand.vmem [shape: s32[1,512], index: 0, kind: input, shape index: {}]
  %s1 = inlined_call_operand.vmem [shape: f32[512,32], index: 1, kind: input, shape index: {}]
  %s2 = inlined_call_operand.vmem [shape: f32[5,32], index: 2, kind: input, shape index: {}]
  %s3 = inlined_call_operand.vmem [shape: f32[1,512], index: 3, kind: output, shape index: {}]
  %s4 = sld [smem:[#allocation0]]
  $region45: #{mpcl_loss.1} parent=0
    _
  %s6 = ssub.s32 1, %s4
  %s7 = scalar_select 0, %s6, %s4
  loop: start=0, step=1, limit=4
  $region2: #{mpcl_loss.1} parent=0 // loop_pre_header
    _
  $region3: #{mpcl_loss.1} parent=0 // loop_header
    %s9 = sphi 0, %s13
    %p10 = scmp.ge.s32.totalorder %s9, 4
    %s19 = sphi 0, %s21
    %s22 = sphi 0, %s19
    %s23 = sphi 0, %s22
    %s39 = sphi 0, %s23
    %s45 = sphi 0, %s47
    %s48 = sphi 0, %s45
    %s49 = sphi 0, %s48
    %s65 = sphi 0, %s49
    %s69 = sphi 0, %s69
    %s71 = sphi 0, %s69
    %s72 = sphi 0, %s71
    %s86 = sphi 0, %s72
    %s92 = sphi 0, %s94
    %s95 = sphi 0, %s92
    %s96 = sphi 0, %s95
    %s112 = sphi 0, %s96
  $region4: #{mpcl_loss.1} parent=0 // loop_header_branch
    %12 = sbr.rel (%p10) target = $region8
  $region5: #{mpcl_loss.1} parent=0 // loop_body
    %s14 = ssub.s32 %s9, 1
    %s15 = ssub.s32 %s9, 2
    %s16 = sadd.s32 %s9, 1
    %s17 = ssub.s32 %s9, %s16
    %p18 = scmp.eq.s32.totalorder %s17, 0
    %s20 = sadd.s32 %s19, 1
    %s21 = scalar_select %p18, %s19, %s20
    %p24 = pneg %p18
    %p25 = scmp.eq.s32.totalorder %s9, 1
    %p26 = por %p24, %p25
    %p27 = scmp.ne.s32.totalorder %s19, %s22
    %p28 = scmp.eq.s32.totalorder %s9, 0
    %p29 = por %p27, %p28
    %p30 = scmp.ne.s32.totalorder %s19, %s22
    %p31 = scmp.eq.s32.totalorder %s14, 1
    %p32 = por %p30, %p31
    %p33 = scmp.ne.s32.totalorder %s22, %s23
    %p34 = scmp.eq.s32.totalorder %s14, 0
    %p35 = por %p33, %p34
    %p36 = scmp.ne.s32.totalorder %s22, %s23
    %p37 = scmp.eq.s32.totalorder %s15, 1
    %p38 = por %p36, %p37
    %p40 = scmp.ne.s32.totalorder %s23, %s39
    %p41 = scmp.eq.s32.totalorder %s15, 0
    %p42 = por %p40, %p41
    %s43 = ssub.s32 %s9, %s16
    %p44 = scmp.eq.s32.totalorder %s43, 0
    %s46 = sadd.s32 %s45, 1
    %s47 = scalar_select %p44, %s45, %s46
    %p50 = pneg %p44
    %p51 = scmp.eq.s32.totalorder %s9, 1
    %p52 = por %p50, %p51
    %p53 = scmp.ne.s32.totalorder %s45, %s48
    %p54 = scmp.eq.s32.totalorder %s9, 0
    %p55 = por %p53, %p54
    %p56 = scmp.ne.s32.totalorder %s45, %s48
    %p57 = scmp.eq.s32.totalorder %s14, 1
    %p58 = por %p56, %p57
    %p59 = scmp.ne.s32.totalorder %s48, %s49
    %p60 = scmp.eq.s32.totalorder %s14, 0
    %p61 = por %p59, %p60
    %p62 = scmp.ne.s32.totalorder %s48, %s49
    %p63 = scmp.eq.s32.totalorder %s15, 1
    %p64 = por %p62, %p63
    %p66 = scmp.ne.s32.totalorder %s49, %s65
    %p67 = scmp.eq.s32.totalorder %s15, 0
    %p68 = por %p66, %p67
    %s70 = sadd.s32 %s69, 1
    %p73 = scmp.eq.s32.totalorder %s9, 1
    %p74 = scmp.ne.s32.totalorder %s69, %s71
    %p75 = scmp.eq.s32.totalorder %s9, 0
    %p76 = por %p74, %p75
    %p77 = scmp.ne.s32.totalorder %s69, %s71
    %p78 = scmp.eq.s32.totalorder %s14, 1
    %p79 = por %p77, %p78
    %p80 = scmp.ne.s32.totalorder %s71, %s72
    %p81 = scmp.eq.s32.totalorder %s14, 0
    %p82 = por %p80, %p81
    %p83 = scmp.ne.s32.totalorder %s71, %s72
    %p84 = scmp.eq.s32.totalorder %s15, 1
    %p85 = por %p83, %p84
    %p87 = scmp.ne.s32.totalorder %s72, %s86
    %p88 = scmp.eq.s32.totalorder %s15, 0
    %p89 = por %p87, %p88
    %s90 = ssub.s32 %s9, %s16
    %p91 = scmp.eq.s32.totalorder %s90, 0
    %s93 = sadd.s32 %s92, 1
    %s94 = scalar_select %p91, %s92, %s93
    %p97 = pneg %p91
    %p98 = scmp.eq.s32.totalorder %s9, 1
    %p99 = por %p97, %p98
    %p100 = scmp.ne.s32.totalorder %s92, %s95
    %p101 = scmp.eq.s32.totalorder %s9, 0
    %p102 = por %p100, %p101
    %p103 = scmp.ne.s32.totalorder %s92, %s95
    %p104 = scmp.eq.s32.totalorder %s14, 1
    %p105 = por %p103, %p104
    %p106 = scmp.ne.s32.totalorder %s95, %s96
    %p107 = scmp.eq.s32.totalorder %s14, 0
    %p108 = por %p106, %p107
    %p109 = scmp.ne.s32.totalorder %s95, %s96
    %p110 = scmp.eq.s32.totalorder %s15, 1
    %p111 = por %p109, %p110
    %p113 = scmp.ne.s32.totalorder %s96, %s112
    %p114 = scmp.eq.s32.totalorder %s15, 0
    %p115 = por %p113, %p114
    %p116 = scmp.le.s32.totalorder 1, %s9
    %p117 = scmp.lt.s32.totalorder %s9, 3
    %p118 = pnand %p116, %p117
    %p119 = pneg %p118
    // Predicated region
    $region9: #{mpcl_loss.1} parent=5 // pred_check
      _
    $region10: #{mpcl_loss.1} parent=5 // pred_check_branch
      %121 = sbr.rel (%p118) target = $region12
    $region11: #{mpcl_loss.1} parent=5 // pred_region
      %s122 = ssub.s32 %s9, 1
      // Predicated region
      $region13: #{mpcl_loss.1} parent=11 // pred_check
        %p123 = pneg %p82
      $region14: #{mpcl_loss.1} parent=11 // pred_check_branch
        %125 = sbr.rel (%p123) target = $region16
      $region15: #{mpcl_loss.1} parent=11 // pred_region
        _
      $region16: #{mpcl_loss.1} parent=11 // pred_fallthru
        _
    $region12: #{mpcl_loss.1} parent=5 // pred_fallthru
      _
    %p126 = scmp.lt.s32.totalorder %s9, 2
    // Predicated region
    $region17: #{mpcl_loss.1} parent=5 // pred_check
      %p127 = pneg %p126
    $region18: #{mpcl_loss.1} parent=5 // pred_check_branch
      %129 = sbr.rel (%p127) target = $region20
    $region19: #{mpcl_loss.1} parent=5 // pred_region
      // Predicated region
      $region21: #{mpcl_loss.1} parent=19 // pred_check
        %p130 = pneg %p29
      $region22: #{mpcl_loss.1} parent=19 // pred_check_branch
        %132 = sbr.rel (%p130) target = $region24
      $region23: #{mpcl_loss.1} parent=19 // pred_region
        %s133 = smul.u32 2, %s9
        %p134 = scmp.lt.s32.totalorder %s133, 3
        %s135 = scalar_select %p134, %s133, 3
        %s136 = scalar_lea.vmem %s0, %s135
        %s137 = smul.u32 2, %s9
      $region24: #{mpcl_loss.1} parent=19 // pred_fallthru
        _
      // Predicated region
      $region25: #{mpcl_loss.1} parent=19 // pred_check
        %p138 = pneg %p55
      $region26: #{mpcl_loss.1} parent=19 // pred_check_branch
        %140 = sbr.rel (%p138) target = $region28
      $region27: #{mpcl_loss.1} parent=19 // pred_region
        %s141 = smul.u32 32, %s9
        %p142 = scmp.lt.s32.totalorder %s141, 63
        %s143 = scalar_select %p142, %s141, 63
        %s144 = smul.addr %s143, 8
        %s145 = scalar_lea.vmem %s1, %s144
        %s146 = smul.u32 32, %s9
      $region28: #{mpcl_loss.1} parent=19 // pred_fallthru
        _
    $region20: #{mpcl_loss.1} parent=5 // pred_fallthru
      _
    %p147 = scmp.le.s32.totalorder 1, %s9
    %p148 = scmp.lt.s32.totalorder %s9, 3
    %p149 = pnand %p147, %p148
    %p150 = pneg %p149
    // Predicated region
    $region29: #{mpcl_loss.1} parent=5 // pred_check
      _
    $region30: #{mpcl_loss.1} parent=5 // pred_check_branch
      %152 = sbr.rel (%p149) target = $region32
    $region31: #{mpcl_loss.1} parent=5 // pred_region
      %s153 = ssub.s32 %s9, 1
      %s154 = smul.u32 2, %s14
      %p155 = scmp.lt.s32.totalorder %s154, 3
      %s156 = scalar_select %p155, %s154, 3
      %s157 = scalar_lea.vmem %s0, %s156
      %p158 = pneg %p35
      %p159 = pneg %p32
      %s160 = smul.u32 32, %s14
      %p161 = scmp.lt.s32.totalorder %s160, 63
      %s162 = scalar_select %p161, %s160, 63
      %s163 = smul.addr %s162, 8
      %s164 = scalar_lea.vmem %s1, %s163
      %p165 = pneg %p61
      %p166 = pneg %p58
      %p167 = pneg %p82
      %p168 = pneg %p79
      %p169 = pneg %p108
      %p170 = pneg %p105
      %s171 = smul.u32 2, %s14
      %p172 = scmp.lt.s32.totalorder %s171, 3
      %s173 = scalar_select %p172, %s171, 3
      %s174 = scalar_lea.vmem %s3, %s173
      %s175 = smul.u32 2, %s14
      %p176 = scmp.lt.s32.totalorder %s175, 3
      %s177 = scalar_select %p176, %s175, 3
      %s178 = scalar_lea.vmem %s0, %s177
      %s179 = smul.u32 2, %s14
      %s180 = smul.u32 32, %s14
      %p181 = scmp.lt.s32.totalorder %s180, 63
      %s182 = scalar_select %p181, %s180, 63
      %s183 = smul.addr %s182, 8
      %s184 = scalar_lea.vmem %s1, %s183
      %s185 = smul.u32 32, %s14
      %s186 = smul.u32 2, %s14
      %p187 = scmp.lt.s32.totalorder %s186, 3
      %s188 = scalar_select %p187, %s186, 3
      %s189 = scalar_lea.vmem %s3, %s188
      %s190 = smul.u32 2, %s14
      %v191 = vld [vmem:[%s184] sm:$0xff]
      %v192 = vld [vmem:[%s184 + $0x8] sm:$0xff]
      %v193 = vld [vmem:[%s184 + $0x10] sm:$0xff]
      %v194 = vld [vmem:[%s184 + $0x18] sm:$0xff]
      %v195 = vld [vmem:[%s184 + $0x20] sm:$0xff]
      %v196 = vld [vmem:[%s184 + $0x28] sm:$0xff]
      %v197 = vld [vmem:[%s184 + $0x30] sm:$0xff]
      %v198 = vld [vmem:[%s184 + $0x38] sm:$0xff]
      %v199 = vld [vmem:[%s184 + $0x40] sm:$0xff]
      %v200 = vld [vmem:[%s184 + $0x48] sm:$0xff]
      %v201 = vld [vmem:[%s184 + $0x50] sm:$0xff]
      %v202 = vld [vmem:[%s184 + $0x58] sm:$0xff]
      %v203 = vld [vmem:[%s184 + $0x60] sm:$0xff]
      %v204 = vld [vmem:[%s184 + $0x68] sm:$0xff]
      %v205 = vld [vmem:[%s184 + $0x70] sm:$0xff]
      %v206 = vld [vmem:[%s184 + $0x78] sm:$0xff]
      %v207 = vld [vmem:[%s184 + $0x80] sm:$0xff]
      %v208 = vld [vmem:[%s184 + $0x88] sm:$0xff]
      %v209 = vld [vmem:[%s184 + $0x90] sm:$0xff]
      %v210 = vld [vmem:[%s184 + $0x98] sm:$0xff]
      %v211 = vld [vmem:[%s184 + $0xa0] sm:$0xff]
      %v212 = vld [vmem:[%s184 + $0xa8] sm:$0xff]
      %v213 = vld [vmem:[%s184 + $0xb0] sm:$0xff]
      %v214 = vld [vmem:[%s184 + $0xb8] sm:$0xff]
      %v215 = vld [vmem:[%s184 + $0xc0] sm:$0xff]
      %v216 = vld [vmem:[%s184 + $0xc8] sm:$0xff]
      %v217 = vld [vmem:[%s184 + $0xd0] sm:$0xff]
      %v218 = vld [vmem:[%s184 + $0xd8] sm:$0xff]
      %v219 = vld [vmem:[%s184 + $0xe0] sm:$0xff]
      %v220 = vld [vmem:[%s184 + $0xe8] sm:$0xff]
      %v221 = vld [vmem:[%s184 + $0xf0] sm:$0xff]
      %v222 = vld [vmem:[%s184 + $0xf8] sm:$0xff]
      %v223 = vld [vmem:[%s2] sm:$0x1f]
      %vm224 = vcmask 261120
      %v226 = vsel %vm224, %v223, 0
      %v229 = vsel %vm224, %v191, 0
      %v232 = vsel %vm224, %v192, 0
      %v235 = vsel %vm224, %v193, 0
      %v238 = vsel %vm224, %v194, 0
      %v241 = vsel %vm224, %v195, 0
      %v244 = vsel %vm224, %v196, 0
      %v247 = vsel %vm224, %v197, 0
      %v250 = vsel %vm224, %v198, 0
      %v253 = vsel %vm224, %v199, 0
      %v256 = vsel %vm224, %v200, 0
      %v259 = vsel %vm224, %v201, 0
      %v262 = vsel %vm224, %v202, 0
      %v265 = vsel %vm224, %v203, 0
      %v268 = vsel %vm224, %v204, 0
      %v271 = vsel %vm224, %v205, 0
      %v274 = vsel %vm224, %v206, 0
      %v277 = vsel %vm224, %v207, 0
      %v280 = vsel %vm224, %v208, 0
      %v283 = vsel %vm224, %v209, 0
      %v286 = vsel %vm224, %v210, 0
      %v289 = vsel %vm224, %v211, 0
      %v292 = vsel %vm224, %v212, 0
      %v295 = vsel %vm224, %v213, 0
      %v298 = vsel %vm224, %v214, 0
      %v301 = vsel %vm224, %v215, 0
      %v304 = vsel %vm224, %v216, 0
      %v307 = vsel %vm224, %v217, 0
      %v310 = vsel %vm224, %v218, 0
      %v313 = vsel %vm224, %v219, 0
      %v316 = vsel %vm224, %v220, 0
      %v319 = vsel %vm224, %v221, 0
      %v322 = vsel %vm224, %v222, 0
      %324 = vmatpush.xpose.msra.mxu0 %v274
      %325 = vmatpush.xpose.msra.mxu0 %v271
      %326 = vmatpush.xpose.msra.mxu0 %v268
      %327 = vmatpush.xpose.msra.mxu0 %v265
      %328 = vmatpush.xpose.msra.mxu0 %v262
      %329 = vmatpush.xpose.msra.mxu0 %v259
      %330 = vmatpush.xpose.msra.mxu0 %v256
      %331 = vmatpush.xpose.msra.mxu0 %v253
      %332 = vmatpush.xpose.msra.mxu0 %v250
      %333 = vmatpush.xpose.msra.mxu0 %v247
      %334 = vmatpush.xpose.msra.mxu0 %v244
      %335 = vmatpush.xpose.msra.mxu0 %v241
      %336 = vmatpush.xpose.msra.mxu0 %v238
      %337 = vmatpush.xpose.msra.mxu0 %v235
      %338 = vmatpush.xpose.msra.mxu0 %v232
      %339 = vmatpush.xpose.msra.mxu0 %v229
      %340 = vmatmul.f32.gmra.mxu0 %v226
      %v341 = vpop.f32.mrf.mxu0
      %v342 = vadd.f32 0.0, %v341
      %343 = vdwg.mxu0
      %344 = vmatpush.xpose.msra.mxu0 %v322
      %345 = vmatpush.xpose.msra.mxu0 %v319
      %346 = vmatpush.xpose.msra.mxu0 %v316
      %347 = vmatpush.xpose.msra.mxu0 %v313
      %348 = vmatpush.xpose.msra.mxu0 %v310
      %349 = vmatpush.xpose.msra.mxu0 %v307
      %350 = vmatpush.xpose.msra.mxu0 %v304
      %351 = vmatpush.xpose.msra.mxu0 %v301
      %352 = vmatpush.xpose.msra.mxu0 %v298
      %353 = vmatpush.xpose.msra.mxu0 %v295
      %354 = vmatpush.xpose.msra.mxu0 %v292
      %355 = vmatpush.xpose.msra.mxu0 %v289
      %356 = vmatpush.xpose.msra.mxu0 %v286
      %357 = vmatpush.xpose.msra.mxu0 %v283
      %358 = vmatpush.xpose.msra.mxu0 %v280
      %359 = vmatpush.xpose.msra.mxu0 %v277
      %360 = vmatmul.f32.gmra.mxu0 %v226
      %v361 = vpop.f32.mrf.mxu0
      %v362 = vadd.f32 0.0, %v361
      %363 = vdwg.mxu0
      %v364 = vld [vmem:[%s178] sm:$0x3]
      %v365 = vlaneseq
      %v366 = vshrl.u32 %v365, 7
      %v367 = vperm.slane %v364, 0
      %v368 = vperm.slane %v364, 1
      %vm369 = vcmp.eq.s32.totalorder %v367, %v366
      %vm370 = vcmp.eq.s32.totalorder %v368, %v366
      %v371 = vmul.f32 %v342, 14.285714
      %v372 = vmul.f32 %v362, 14.285714
      %vm373 = vcmask 1044480
      %v374 = vsel %vm373, %v371, -inf
      %v375 = vrot.slane %v374, 4
      %v376 = vmax.f32 %v374, %v375
      %v377 = vrot.slane %v376, 2
      %v378 = vmax.f32 %v376, %v377
      %v379 = vrot.slane %v378, 1
      %v380 = vmax.f32 %v378, %v379
      %v381 = vsel %vm373, %v372, -inf
      %v382 = vrot.slane %v381, 4
      %v383 = vmax.f32 %v381, %v382
      %v384 = vrot.slane %v383, 2
      %v385 = vmax.f32 %v383, %v384
      %v386 = vrot.slane %v385, 1
      %v387 = vmax.f32 %v385, %v386
      %v388 = vsub.f32 %v371, %v380
      %v389 = vsub.f32 %v372, %v387
      %v390 = vmul.f32 %v342, %v342
      %v391 = vmul.f32 %v362, %v362
      %v392 = vsub.f32 1.0, %v390
      %v393 = vsub.f32 1.0, %v391
      %v394 = vmax.f32 %v392, 0.0001
      %v395 = vmax.f32 %v393, 0.0001
      %v396 = vmin.f32 %v394, 1.0
      %v397 = vmin.f32 %v395, 1.0
      %v398 = vrsqrt.pop %v396
      %v399 = vmul.f32 %v398, %v396
      %v400 = vmul.f32 %v399, %v398
      %v401 = vmul.f32 0.5, %v400
      %v402 = vsub.f32 1.5, %v401
      %v403 = vmul.f32 %v398, %v402
      %v404 = vmul.f32 %v396, %v403
      %vm405 = vcmp.eq.f32.partialorder %v396, inf
      %v406 = vsel %vm405, %v396, %v404
      %vm407 = vcmp.eq.f32.partialorder %v396, 0.0
      %v408 = vand.u32 %v396, 2147483648
      %v409 = vsel %vm407, %v408, %v406
      %v410 = vrsqrt.pop %v397
      %v411 = vmul.f32 %v410, %v397
      %v412 = vmul.f32 %v411, %v410
      %v413 = vmul.f32 0.5, %v412
      %v414 = vsub.f32 1.5, %v413
      %v415 = vmul.f32 %v410, %v414
      %v416 = vmul.f32 %v397, %v415
      %vm417 = vcmp.eq.f32.partialorder %v397, inf
      %v418 = vsel %vm417, %v397, %v416
      %vm419 = vcmp.eq.f32.partialorder %v397, 0.0
      %v420 = vand.u32 %v397, 2147483648
      %v421 = vsel %vm419, %v420, %v418
      %v422 = vmul.f32 %v342, 0.87758255
      %v423 = vmul.f32 %v362, 0.87758255
      %v424 = vmul.f32 %v409, 0.47942555
      %v425 = vmul.f32 %v421, 0.47942555
      %v426 = vsub.f32 %v422, %v424
      %v427 = vsub.f32 %v423, %v425
      %vm428 = vcmp.gt.f32.partialorder %v342, -0.87758255
      %vm429 = vcmp.gt.f32.partialorder %v362, -0.87758255
      %v430 = vsub.f32 %v342, 0.23971277
      %v431 = vsub.f32 %v362, 0.23971277
      %v432 = vsel %vm428, %v426, %v430
      %v433 = vsel %vm429, %v427, %v431
      %v434 = vmul.f32 %v432, 14.285714
      %v435 = vmul.f32 %v433, 14.285714
      %v436 = vsel %vm373, %v434, -inf
      %v437 = vrot.slane %v436, 4
      %v438 = vmax.f32 %v436, %v437
      %v439 = vrot.slane %v438, 2
      %v440 = vmax.f32 %v438, %v439
      %v441 = vrot.slane %v440, 1
      %v442 = vmax.f32 %v440, %v441
      %v443 = vsel %vm373, %v435, -inf
      %v444 = vrot.slane %v443, 4
      %v445 = vmax.f32 %v443, %v444
      %v446 = vrot.slane %v445, 2
      %v447 = vmax.f32 %v445, %v446
      %v448 = vrot.slane %v447, 1
      %v449 = vmax.f32 %v447, %v448
      %v450 = vsub.f32 %v434, %v442
      %v451 = vsub.f32 %v435, %v449
      %v452 = vsel %vm369, %v450, %v388
      %v453 = vsel %vm370, %v451, %v389
      %v454 = vmul.f32 %v452, 1.442695
      %v455 = vpow.pop %v454
      %v456 = vmul.f32 %v453, 1.442695
      %v457 = vpow.pop %v456
      %v458 = vsel %vm373, %v455, 0.0
      %v459 = vrot.slane %v458, 4
      %v460 = vadd.f32 %v458, %v459
      %v461 = vrot.slane %v460, 2
      %v462 = vadd.f32 %v460, %v461
      %v463 = vrot.slane %v462, 1
      %v464 = vadd.f32 %v462, %v463
      %v465 = vsel %vm373, %v457, 0.0
      %v466 = vrot.slane %v465, 4
      %v467 = vadd.f32 %v465, %v466
      %v468 = vrot.slane %v467, 2
      %v469 = vadd.f32 %v467, %v468
      %v470 = vrot.slane %v469, 1
      %v471 = vadd.f32 %v469, %v470
      %v472 = vadd.f32 %v464, 0.0001
      %v473 = vadd.f32 %v471, 0.0001
      %v474 = vlog2.pop %v472
      %v475 = vmul.f32 %v474, 0.6931472
      %v476 = vlog2.pop %v473
      %v477 = vmul.f32 %v476, 0.6931472
      %v478 = vsub.f32 %v452, %v475
      %v479 = vsub.f32 %v453, %v477
      %v480 = vsel %vm369, %v478, 0.0
      %v481 = vsel %vm370, %v479, 0.0
      %v482 = vsel %vm373, %v480, 0.0
      %v483 = vrot.slane %v482, 4
      %v484 = vadd.f32 %v482, %v483
      %v485 = vrot.slane %v484, 2
      %v486 = vadd.f32 %v484, %v485
      %v487 = vrot.slane %v486, 1
      %v488 = vadd.f32 %v486, %v487
      %v489 = vsel %vm373, %v481, 0.0
      %v490 = vrot.slane %v489, 4
      %v491 = vadd.f32 %v489, %v490
      %v492 = vrot.slane %v491, 2
      %v493 = vadd.f32 %v491, %v492
      %v494 = vrot.slane %v493, 1
      %v495 = vadd.f32 %v493, %v494
      %v496 = vmul.f32 %v488, -1.0
      %v497 = vmul.f32 %v495, -1.0
      %v500 = vrot.slane %v497, 7
      %vm501 = vcmask 1040384
      %v502 = vsel %vm501, %v496, %v500
      %v504 = vlaneseq
      %vm505 = vcmp.ge.s32.totalorder %v504, 0
      %vm506 = vcmp.lt.s32.totalorder %v504, 256
      %vm507 = vmand %vm505, %vm506
      %508 = vst.msk [vmem:[%s189] sm:$0x3] %vm507, %v502
      %s509 = smul.u32 2, %s14
      %p510 = scmp.lt.s32.totalorder %s509, 3
      %s511 = scalar_select %p510, %s509, 3
      %s512 = scalar_lea.vmem %s3, %s511
      // Predicated region
      $region33: #{mpcl_loss.1} parent=31 // pred_check
        %p513 = pneg %p105
      $region34: #{mpcl_loss.1} parent=31 // pred_check_branch
        %515 = sbr.rel (%p513) target = $region36
      $region35: #{mpcl_loss.1} parent=31 // pred_region
        %s516 = smul.u32 2, %s14
      $region36: #{mpcl_loss.1} parent=31 // pred_fallthru
        _
    $region32: #{mpcl_loss.1} parent=5 // pred_fallthru
      _
    %p517 = scmp.le.s32.totalorder 2, %s9
    // Predicated region
    $region37: #{mpcl_loss.1} parent=5 // pred_check
      %p518 = pneg %p517
    $region38: #{mpcl_loss.1} parent=5 // pred_check_branch
      %520 = sbr.rel (%p518) target = $region40
    $region39: #{mpcl_loss.1} parent=5 // pred_region
      %s521 = ssub.s32 %s9, 2
      // Predicated region
      $region41: #{mpcl_loss.1} parent=39 // pred_check
        %p522 = pneg %p111
      $region42: #{mpcl_loss.1} parent=39 // pred_check_branch
        %524 = sbr.rel (%p522) target = $region44
      $region43: #{mpcl_loss.1} parent=39 // pred_region
        %s525 = smul.u32 2, %s15
        %p526 = scmp.lt.s32.totalorder %s525, 3
        %s527 = scalar_select %p526, %s525, 3
        %s528 = scalar_lea.vmem %s3, %s527
      $region44: #{mpcl_loss.1} parent=39 // pred_fallthru
        _
    $region40: #{mpcl_loss.1} parent=5 // pred_fallthru
      _
  $region6: #{mpcl_loss.1} parent=0 // loop_footer
    %s13 = sadd.s32 1, %s9
  $region7: #{mpcl_loss.1} parent=0 // loop_footer_branch
    %8 = sbr.rel target = $region3
  $region8: #{mpcl_loss.1} parent=0 // loop_exit
    _

</llo_original>
